<compile_context>
chip_gen: v7x
topology: tpu7x:2x2x1
jax: 0.10.0
libtpu: 0.0.40
codegen_flags: <defaults>
</compile_context>

<pallas_src>
import jax
import jax.numpy as jnp
from jax.experimental import pallas as pl
from jax.experimental.pallas import tpu as pltpu


# ----------------------------------------------------------------------------
# Small shape helpers.
# ----------------------------------------------------------------------------
def _round_up(x, m):
    return ((x + m - 1) // m) * m


def _pad2d(a, shape):
    return jnp.pad(a, [(0, s - d) for d, s in zip(a.shape, shape)])


# ----------------------------------------------------------------------------
# Pallas kernel: 3-layer MLP readout.  Grid = (task, row_tile).
# Weights/biases are VMEM-resident across row tiles (index_map invariant in r).
# ----------------------------------------------------------------------------
def _make_readout_kernel(tr, hpad, opad):
    def kernel(rows_ref, x_ref, w1_ref, w2_ref, w3_ref, b_ref, o_ref):
        t = pl.program_id(0)
        r = pl.program_id(1)

        @pl.when(r * tr < rows_ref[t])        # skip fully-padded row tiles
        def _():
            x = x_ref[0]                      # (TR, Din)   bf16
            b = b_ref[0]                      # (3, Bpad)   f32
            h = jnp.dot(x, w1_ref[0], preferred_element_type=jnp.float32)
            h = jnp.maximum(h + b[0:1, :hpad], 0.0)            # f32 on VPU
            h = jnp.dot(h.astype(jnp.bfloat16), w2_ref[0],
                        preferred_element_type=jnp.float32)
            h = jnp.maximum(h + b[1:2, :hpad], 0.0)
            o = jnp.dot(h.astype(jnp.bfloat16), w3_ref[0],
                        preferred_element_type=jnp.float32)
            o_ref[0] = (o + b[2:3, :opad]).astype(o_ref.dtype)  # lane-dense
    return kernel


# ----------------------------------------------------------------------------
# One-time parameter preparation (hoisted out of the forward pass).
# Groups tasks by (din, hidden, dout) shape class; pads weights to lane
# multiples, casts to bf16, collapses the 3 biases into one (3, Bpad) slab.
# ----------------------------------------------------------------------------
def prepare_stdec_params(node_params, edge_params, row_tile=256):
    classes = {}
    for kind, pdict in (("node", node_params), ("edge", edge_params)):
        for name, p in pdict.items():
            din, hid = p[0].shape
            dout = p[4].shape[1]
            c = classes.setdefault((din, hid, dout), {"keys": [], "params": []})
            c["keys"].append((kind, name))
            c["params"].append(p)

    prepped = {}
    for (din, hid, dout), c in classes.items():
        hpad = _round_up(hid, 128)
        opad = _round_up(dout, 128)
        bpad = max(hpad, opad)
        bf = jnp.bfloat16
        w1 = jnp.stack([_pad2d(p[0].astype(bf), (din, hpad)) for p in c["params"]])
        w2 = jnp.stack([_pad2d(p[2].astype(bf), (hpad, hpad)) for p in c["params"]])
        w3 = jnp.stack([_pad2d(p[4].astype(bf), (hpad, opad)) for p in c["params"]])
        bias = []
        for p in c["params"]:
            b = jnp.zeros((3, bpad), jnp.float32)
            b = b.at[0, :hid].set(p[1].reshape(-1).astype(jnp.float32))
            b = b.at[1, :hid].set(p[3].reshape(-1).astype(jnp.float32))
            b = b.at[2, :dout].set(p[5].reshape(-1).astype(jnp.float32))
            bias.append(b)
        prepped[(din, hid, dout)] = dict(
            keys=c["keys"], params=c["params"],
            w1=w1, w2=w2, w3=w3, b=jnp.stack(bias),
            din=din, hid=hid, dout=dout,
            hpad=hpad, opad=opad, bpad=bpad, row_tile=row_tile)
    return prepped


# ----------------------------------------------------------------------------
# One pallas_call per shape class: all tasks in the class fused on grid axis 0,
# row tiles on grid axis 1.
# ----------------------------------------------------------------------------
def _fused_readout_pallas(feats, rows, cls):
    """feats: list of (rows_i, din) f32 activations, one per task in the class.
    Returns (T, Rpad, Opad) f32; the caller slices back valid rows / dout."""
    t_count = len(feats)
    din, hpad, opad, bpad = cls["din"], cls["hpad"], cls["opad"], cls["bpad"]

    row_align = 16                                   # bf16 sublane packing
    rmax = max(rows)
    tr = min(cls["row_tile"], _round_up(rmax, row_align))
    tr = _round_up(tr, row_align)
    rpad = _round_up(rmax, tr)
    n_row_tiles = rpad // tr

    # Only activations are padded per forward call (weights were prepped once).
    xs = jnp.stack([_pad2d(x.astype(jnp.bfloat16), (rpad, din)) for x in feats])
    rows_arr = jnp.asarray(rows, dtype=jnp.int32)

    flops = 2 * sum(_round_up(r, tr) for r in rows) * (
        din * hpad + hpad * hpad + hpad * opad)
    bytes_accessed = (2 * (xs.size + cls["w1"].size + cls["w2"].size
                           + cls["w3"].size)
                      + 4 * (cls["b"].size + t_count * rpad * opad))

    kernel = _make_readout_kernel(tr, hpad, opad)

    out = pl.pallas_call(
        kernel,
        out_shape=jax.ShapeDtypeStruct((t_count, rpad, opad), jnp.float32),
        grid_spec=pltpu.PrefetchScalarGridSpec(
            num_scalar_prefetch=1,                   # per-task row counts
            grid=(t_count, n_row_tiles),
            in_specs=[
                pl.BlockSpec((1, tr, din), lambda t, r, rows_ref: (t, r, 0)),
                pl.BlockSpec((1, din, hpad), lambda t, r, rows_ref: (t, 0, 0)),
                pl.BlockSpec((1, hpad, hpad), lambda t, r, rows_ref: (t, 0, 0)),
                pl.BlockSpec((1, hpad, opad), lambda t, r, rows_ref: (t, 0, 0)),
                pl.BlockSpec((1, 3, bpad), lambda t, r, rows_ref: (t, 0, 0)),
            ],
            out_specs=pl.BlockSpec((1, tr, opad),
                                   lambda t, r, rows_ref: (t, r, 0)),
        ),
        compiler_params=pltpu.CompilerParams(
            dimension_semantics=("parallel", "parallel"),  # v7x: 2 TCs balance
            vmem_limit_bytes=32 * 1024 * 1024,             # within v7x 64 MiB
        ),
        cost_estimate=pl.CostEstimate(
            flops=flops, transcendentals=0, bytes_accessed=bytes_accessed),
    )(rows_arr, xs, cls["w1"], cls["w2"], cls["w3"], cls["b"])
    return out


# ----------------------------------------------------------------------------
# Reference / fallback MLP (same bf16-matmul, f32-accumulate recipe).
# ----------------------------------------------------------------------------
def _mlp_reference(x, params, bf16_matmuls=True):
    w1, b1, w2, b2, w3, b3 = params
    cast = (lambda a: a.astype(jnp.bfloat16)) if bf16_matmuls else (lambda a: a)
    h = jnp.dot(cast(x), cast(w1),
                preferred_element_type=jnp.float32) + b1.reshape(1, -1)
    h = jnp.maximum(h, 0.0)
    h = jnp.dot(cast(h), cast(w2),
                preferred_element_type=jnp.float32) + b2.reshape(1, -1)
    h = jnp.maximum(h, 0.0)
    return jnp.dot(cast(h), cast(w3),
                   preferred_element_type=jnp.float32) + b3.reshape(1, -1)


# ----------------------------------------------------------------------------
# STDec forward: per-type dicts of node / edge features (num_samples, rows,
# ndim) -> per-type dicts of stacked per-sample outputs (matching
# torch.stack(v, dim=0)).  Sample loop flattened into rows.
# ----------------------------------------------------------------------------
def st_dec_forward(y, e, prepped, *, use_pallas=None, min_rows_for_pallas=4096):
    pred_y, pred_e = {}, {}
    for cls in prepped.values():
        feats, rows, shapes = [], [], []
        for kind, name in cls["keys"]:
            v = y[name] if kind == "node" else e[name]
            s, n, _ = v.shape
            feats.append(v.reshape(s * n, v.shape[-1]))
            rows.append(s * n)
            shapes.append((s, n))
        total_rows = sum(rows)
        go_pallas = (use_pallas if use_pallas is not None
                     else total_rows >= min_rows_for_pallas)
        if go_pallas:
            out = _fused_readout_pallas(feats, rows, cls)
            for ti, (kind, name) in enumerate(cls["keys"]):
                s, n = shapes[ti]
                res = out[ti, :rows[ti], :cls["dout"]].reshape(s, n, cls["dout"])
                (pred_y if kind == "node" else pred_e)[name] = res
        else:
            # Toy sizes: pallas_call fixed cost exceeds compute; let XLA fuse.
            for ti, (kind, name) in enumerate(cls["keys"]):
                s, n = shapes[ti]
                res = _mlp_reference(feats[ti], cls["params"][ti]).reshape(
                    s, n, cls["dout"])
                (pred_y if kind == "node" else pred_e)[name] = res
    return pred_y, pred_e


# ----------------------------------------------------------------------------
# Deterministic synthetic parameter init (no checkpoint loading).
# ----------------------------------------------------------------------------
def init_mlp_params(key, d_in, hidden, d_out):
    k1, k2, k3, k4, k5, k6 = jax.random.split(key, 6)
    scale = lambda fan: 1.0 / jnp.sqrt(jnp.float32(fan))
    return (
        jax.random.normal(k1, (d_in, hidden), jnp.float32) * scale(d_in),
        jax.random.normal(k4, (1, hidden), jnp.float32) * 0.1,
        jax.random.normal(k2, (hidden, hidden), jnp.float32) * scale(hidden),
        jax.random.normal(k5, (1, hidden), jnp.float32) * 0.1,
        jax.random.normal(k3, (hidden, d_out), jnp.float32) * scale(hidden),
        jax.random.normal(k6, (1, d_out), jnp.float32) * 0.1,
    )


if __name__ == "__main__":
    # ---- Case 1: shapes consistent with the module ------------------------
    #   num_samples=2, num_nodes=8, num_edges=16,
    #   STATE_DIMS['VEHICLE']=4, hidden_dim=32, out_dim=loss_func_param(l2,4)=4
    num_samples, num_nodes, num_edges = 2, 8, 16
    state_dim, hidden_dim, out_dim = 4, 32, 4

    key = jax.random.PRNGKey(0)
    k_y, k_e, k_np, k_ep, k_rest = jax.random.split(key, 5)

    y = {"VEHICLE": jax.random.normal(
        k_y, (num_samples, num_nodes, state_dim), jnp.float32)}
    e = {"VEHICLE-VEHICLE": jax.random.normal(
        k_e, (num_samples, num_edges, state_dim), jnp.float32)}
    node_params = {"VEHICLE": init_mlp_params(k_np, state_dim, hidden_dim, out_dim)}
    edge_params = {"VEHICLE-VEHICLE": init_mlp_params(k_ep, state_dim, hidden_dim, out_dim)}

    prepped = prepare_stdec_params(node_params, edge_params)   # one-time prep

    # Force the Pallas path (the size-threshold dispatch would route these toy
    # shapes to the plain XLA fallback).
    pred_y, pred_e = st_dec_forward(y, e, prepped, use_pallas=True)
    jax.block_until_ready((pred_y, pred_e))

    ref_y = _mlp_reference(
        y["VEHICLE"].reshape(-1, state_dim),
        node_params["VEHICLE"]).reshape(num_samples, num_nodes, out_dim)
    ref_e = _mlp_reference(
        e["VEHICLE-VEHICLE"].reshape(-1, state_dim),
        edge_params["VEHICLE-VEHICLE"]).reshape(num_samples, num_edges, out_dim)

    assert pred_y["VEHICLE"].shape == (num_samples, num_nodes, out_dim)
    assert pred_e["VEHICLE-VEHICLE"].shape == (num_samples, num_edges, out_dim)
    assert jnp.allclose(pred_y["VEHICLE"], ref_y, atol=1e-2, rtol=1e-2)
    assert jnp.allclose(pred_e["VEHICLE-VEHICLE"], ref_e, atol=1e-2, rtol=1e-2)

    # ---- Case 2: multiple row tiles + pl.when skipping of padded tiles ----
    ns2, nn2, ne2 = 3, 50, 120
    sd2, hd2, od2 = 6, 64, 6
    ky2, ke2, knp2, kep2 = jax.random.split(k_rest, 4)
    y2 = {"VEHICLE": jax.random.normal(ky2, (ns2, nn2, sd2), jnp.float32)}
    e2 = {"VEHICLE-VEHICLE": jax.random.normal(ke2, (ns2, ne2, sd2), jnp.float32)}
    np2 = {"VEHICLE": init_mlp_params(knp2, sd2, hd2, od2)}
    ep2 = {"VEHICLE-VEHICLE": init_mlp_params(kep2, sd2, hd2, od2)}
    prepped2 = prepare_stdec_params(np2, ep2, row_tile=128)
    py2, pe2 = st_dec_forward(y2, e2, prepped2, use_pallas=True)
    jax.block_until_ready((py2, pe2))
    r_y2 = _mlp_reference(y2["VEHICLE"].reshape(-1, sd2),
                          np2["VEHICLE"]).reshape(ns2, nn2, od2)
    r_e2 = _mlp_reference(e2["VEHICLE-VEHICLE"].reshape(-1, sd2),
                          ep2["VEHICLE-VEHICLE"]).reshape(ns2, ne2, od2)
    assert jnp.allclose(py2["VEHICLE"], r_y2, atol=1e-2, rtol=1e-2)
    assert jnp.allclose(pe2["VEHICLE-VEHICLE"], r_e2, atol=1e-2, rtol=1e-2)

    print("KERNEL_OK")
</pallas_src>

<mosaic_0001>
module attributes {stable_mosaic.version = 11 : i64} {
  func.func @kernel(%arg0: i32, %arg1: i32, %arg2: memref<2xi32, #tpu.memory_space<smem>>, %arg3: memref<1x32x4xbf16, #tpu.memory_space<vmem>>, %arg4: memref<1x4x128xbf16, #tpu.memory_space<vmem>>, %arg5: memref<1x128x128xbf16, #tpu.memory_space<vmem>>, %arg6: memref<1x128x128xbf16, #tpu.memory_space<vmem>>, %arg7: memref<1x3x128xf32, #tpu.memory_space<vmem>>, %arg8: memref<1x32x128xf32, #tpu.memory_space<vmem>>) attributes {dimension_semantics = [#tpu.dimension_semantics<parallel>, #tpu.dimension_semantics<parallel>], iteration_bounds = array<i64: 2, 1>, scalar_prefetch = 1 : i64, scratch_operands = 0 : i64, tpu.core_type = #tpu.core_type<tc>, window_params = [{transform_indices = @transform_0, window_bounds = array<i64: 1, 32, 4>}, {transform_indices = @transform_1, window_bounds = array<i64: 1, 4, 128>}, {transform_indices = @transform_2, window_bounds = array<i64: 1, 128, 128>}, {transform_indices = @transform_3, window_bounds = array<i64: 1, 128, 128>}, {transform_indices = @transform_4, window_bounds = array<i64: 1, 3, 128>}, {transform_indices = @transform_5, window_bounds = array<i64: 1, 32, 128>}]} {
    %c32_i32 = arith.constant 32 : i32
    %0 = arith.muli %arg1, %c32_i32 : i32
    %1 = arith.index_cast %arg0 : i32 to index
    %2 = memref.load %arg2[%1] : memref<2xi32, #tpu.memory_space<smem>>
    %3 = arith.cmpi slt, %0, %2 : i32
    %4 = arith.extui %3 : i1 to i32
    %c0_i32 = arith.constant 0 : i32
    %5 = arith.cmpi ne, %4, %c0_i32 : i32
    scf.if %5 {
      %c0 = arith.constant 0 : index
      %c0_0 = arith.constant 0 : index
      %c0_1 = arith.constant 0 : index
      %6 = vector.load %arg3[%c0, %c0_0, %c0_1] : memref<1x32x4xbf16, #tpu.memory_space<vmem>>, vector<1x32x4xbf16>
      %7 = vector.shape_cast %6 : vector<1x32x4xbf16> to vector<32x4xbf16>
      %c0_2 = arith.constant 0 : index
      %c0_3 = arith.constant 0 : index
      %c0_4 = arith.constant 0 : index
      %8 = vector.load %arg7[%c0_2, %c0_3, %c0_4] : memref<1x3x128xf32, #tpu.memory_space<vmem>>, vector<1x3x128xf32>
      %9 = vector.shape_cast %8 : vector<1x3x128xf32> to vector<3x128xf32>
      %c0_5 = arith.constant 0 : index
      %c0_6 = arith.constant 0 : index
      %c0_7 = arith.constant 0 : index
      %10 = vector.load %arg4[%c0_5, %c0_6, %c0_7] : memref<1x4x128xbf16, #tpu.memory_space<vmem>>, vector<1x4x128xbf16>
      %11 = vector.shape_cast %10 : vector<1x4x128xbf16> to vector<4x128xbf16>
      %cst = arith.constant dense<0.000000e+00> : vector<32x128xf32>
      %12 = tpu.matmul %7, %11, %cst {dimension_numbers = #tpu.dot_dimension_numbers<[1], [0], [0], [1], [0, 0, 1, 1], [], []>} : vector<32x4xbf16>, vector<4x128xbf16>, vector<32x128xf32> -> vector<32x128xf32>
      %13 = vector.extract_strided_slice %9 {offsets = [0, 0], sizes = [1, 128], strides = [1, 1]} : vector<3x128xf32> to vector<1x128xf32>
      %14 = vector.broadcast %13 : vector<1x128xf32> to vector<32x128xf32>
      %15 = arith.addf %12, %14 : vector<32x128xf32>
      %cst_8 = arith.constant 0.000000e+00 : f32
      %16 = vector.broadcast %cst_8 : f32 to vector<32x128xf32>
      %17 = arith.maximumf %15, %16 : vector<32x128xf32>
      %18 = arith.truncf %17 : vector<32x128xf32> to vector<32x128xbf16>
      %c0_9 = arith.constant 0 : index
      %c0_10 = arith.constant 0 : index
      %c0_11 = arith.constant 0 : index
      %19 = vector.load %arg5[%c0_9, %c0_10, %c0_11] : memref<1x128x128xbf16, #tpu.memory_space<vmem>>, vector<1x128x128xbf16>
      %20 = vector.shape_cast %19 : vector<1x128x128xbf16> to vector<128x128xbf16>
      %cst_12 = arith.constant dense<0.000000e+00> : vector<32x128xf32>
      %21 = tpu.matmul %18, %20, %cst_12 {dimension_numbers = #tpu.dot_dimension_numbers<[1], [0], [0], [1], [0, 0, 1, 1], [], []>} : vector<32x128xbf16>, vector<128x128xbf16>, vector<32x128xf32> -> vector<32x128xf32>
      %22 = vector.extract_strided_slice %9 {offsets = [1, 0], sizes = [1, 128], strides = [1, 1]} : vector<3x128xf32> to vector<1x128xf32>
      %23 = vector.broadcast %22 : vector<1x128xf32> to vector<32x128xf32>
      %24 = arith.addf %21, %23 : vector<32x128xf32>
      %cst_13 = arith.constant 0.000000e+00 : f32
      %25 = vector.broadcast %cst_13 : f32 to vector<32x128xf32>
      %26 = arith.maximumf %24, %25 : vector<32x128xf32>
      %27 = arith.truncf %26 : vector<32x128xf32> to vector<32x128xbf16>
      %c0_14 = arith.constant 0 : index
      %c0_15 = arith.constant 0 : index
      %c0_16 = arith.constant 0 : index
      %28 = vector.load %arg6[%c0_14, %c0_15, %c0_16] : memref<1x128x128xbf16, #tpu.memory_space<vmem>>, vector<1x128x128xbf16>
      %29 = vector.shape_cast %28 : vector<1x128x128xbf16> to vector<128x128xbf16>
      %cst_17 = arith.constant dense<0.000000e+00> : vector<32x128xf32>
      %30 = tpu.matmul %27, %29, %cst_17 {dimension_numbers = #tpu.dot_dimension_numbers<[1], [0], [0], [1], [0, 0, 1, 1], [], []>} : vector<32x128xbf16>, vector<128x128xbf16>, vector<32x128xf32> -> vector<32x128xf32>
      %31 = vector.extract_strided_slice %9 {offsets = [2, 0], sizes = [1, 128], strides = [1, 1]} : vector<3x128xf32> to vector<1x128xf32>
      %32 = vector.broadcast %31 : vector<1x128xf32> to vector<32x128xf32>
      %33 = arith.addf %30, %32 : vector<32x128xf32>
      %c0_18 = arith.constant 0 : index
      %c0_19 = arith.constant 0 : index
      %c0_20 = arith.constant 0 : index
      %34 = vector.load %arg8[%c0_18, %c0_19, %c0_20] : memref<1x32x128xf32, #tpu.memory_space<vmem>>, vector<1x32x128xf32>
      %35 = vector.shape_cast %34 : vector<1x32x128xf32> to vector<32x128xf32>
      %36 = vector.shape_cast %33 : vector<32x128xf32> to vector<1x32x128xf32>
      tpu.vector_store %arg8[%c0_18, %c0_19, %c0_20], %36 {strides = array<i32>} : memref<1x32x128xf32, #tpu.memory_space<vmem>>, vector<1x32x128xf32>,
    } else {
    }
    return
  }
  func.func @transform_0(%arg0: i32, %arg1: i32, %arg2: memref<2xi32, #tpu.memory_space<smem>>) -> (i32, i32, i32) {
    %c0_i32 = arith.constant 0 : i32
    %c0_i32_0 = arith.constant 0 : i32
    return %arg0, %arg1, %c0_i32 : i32, i32, i32
  }
  func.func @transform_1(%arg0: i32, %arg1: i32, %arg2: memref<2xi32, #tpu.memory_space<smem>>) -> (i32, i32, i32) {
    %c0_i32 = arith.constant 0 : i32
    %c0_i32_0 = arith.constant 0 : i32
    %c0_i32_1 = arith.constant 0 : i32
    return %arg0, %c0_i32, %c0_i32_0 : i32, i32, i32
  }
  func.func @transform_2(%arg0: i32, %arg1: i32, %arg2: memref<2xi32, #tpu.memory_space<smem>>) -> (i32, i32, i32) {
    %c0_i32 = arith.constant 0 : i32
    %c0_i32_0 = arith.constant 0 : i32
    %c0_i32_1 = arith.constant 0 : i32
    return %arg0, %c0_i32, %c0_i32_0 : i32, i32, i32
  }
  func.func @transform_3(%arg0: i32, %arg1: i32, %arg2: memref<2xi32, #tpu.memory_space<smem>>) -> (i32, i32, i32) {
    %c0_i32 = arith.constant 0 : i32
    %c0_i32_0 = arith.constant 0 : i32
    %c0_i32_1 = arith.constant 0 : i32
    return %arg0, %c0_i32, %c0_i32_0 : i32, i32, i32
  }
  func.func @transform_4(%arg0: i32, %arg1: i32, %arg2: memref<2xi32, #tpu.memory_space<smem>>) -> (i32, i32, i32) {
    %c0_i32 = arith.constant 0 : i32
    %c0_i32_0 = arith.constant 0 : i32
    %c0_i32_1 = arith.constant 0 : i32
    return %arg0, %c0_i32, %c0_i32_0 : i32, i32, i32
  }
  func.func @transform_5(%arg0: i32, %arg1: i32, %arg2: memref<2xi32, #tpu.memory_space<smem>>) -> (i32, i32, i32) {
    %c0_i32 = arith.constant 0 : i32
    %c0_i32_0 = arith.constant 0 : i32
    return %arg0, %arg1, %c0_i32 : i32, i32, i32
  }
}

</mosaic_0001>

<llo_original>
// kernel: tpu_custom_call.1
$region0: #{tpu_custom_call.1}
  #allocation0 [shape = 'u32[]', space=smem, size = 0x4, offset = 0x4, fixed_abs, tag = 'smem constant byte address 0x4 - core index']
  #allocation1 [shape = 'u32[144,128]{1,0:T(1,128)}', space=vmem, size = 0x12000, scoped, tag = 'internal scratch']
  #allocation2 [shape = 's32[1]{0}', space=sflag, size = 0x4, scoped, tag = 'scoped memory for tpu_custom_call.1']
  #allocation3 [shape = 'u8[512]{0}', space=smem, size = 0x200, scoped, tag = 'prefetched SMEM operand 0']
  %s0 = inlined_call_operand.vmem [shape: s32[2], index: 0, kind: input, shape index: {}]
  %s1 = inlined_call_operand.vmem [shape: bf16[2,32,4], index: 1, kind: input, shape index: {}]
  %s2 = inlined_call_operand.vmem [shape: bf16[2,4,128], index: 2, kind: input, shape index: {}]
  %s3 = inlined_call_operand.hbm [shape: bf16[2,128,128], index: 3, kind: input, shape index: {}]
  %s4 = inlined_call_operand.hbm [shape: bf16[2,128,128], index: 4, kind: input, shape index: {}]
  %s5 = inlined_call_operand.vmem [shape: f32[2,3,128], index: 5, kind: input, shape index: {}]
  %s6 = inlined_call_operand.hbm [shape: f32[2,32,128], index: 6, kind: output, shape index: {}]
  %s7 = sld [smem:[#allocation0]]
  $region65: #{tpu_custom_call.1} parent=0
    _
  %s9 = ssub.s32 1, %s7
  %s10 = scalar_select 0, %s9, %s7
  %s11 = sshll.u32 %s0, 4
  %s12 = int_to_ptr.vmem [resolvable:$true] %s11
  %14 = dma.vmem_to_smem %s12, 16, [#allocation3], [#allocation2]
  %15 = dma.done [#allocation2], 16
  %16 = sfence
  $region1: #{tpu_custom_call.1} parent=0
    #allocation4 [shape = 'u8[65536]{0}', space=vmem, size = 0x10000, scoped, tag = 'input window, operand 3']
    #allocation5 [shape = 's32[2]{0}', space=sflag, size = 0x8, scoped, tag = 'scoped memory for tpu_custom_call.1']
    #allocation6 [shape = 's32[2]{0}', space=sflag, size = 0x8, scoped, tag = 'scoped memory for tpu_custom_call.1']
    #allocation7 [shape = 'u8[65536]{0}', space=vmem, size = 0x10000, scoped, tag = 'input window, operand 4']
    #allocation8 [shape = 's32[2]{0}', space=sflag, size = 0x8, scoped, tag = 'scoped memory for tpu_custom_call.1']
    #allocation9 [shape = 'u8[32768]{0}', space=vmem, size = 0x8000, scoped, tag = 'output window, operand 0']
    %17 = vsyncpa [#allocation5], 0
    %s18 = scalar_lea.sflag [#allocation5], 1
    %19 = vsyncpa %s18, 0
    %20 = vsyncpa [#allocation8], 0
    %s21 = scalar_lea.sflag [#allocation8], 1
    %22 = vsyncpa %s21, 0
    %23 = vsyncpa [#allocation6], 0
    %s24 = scalar_lea.sflag [#allocation6], 1
    %25 = vsyncpa %s24, 0
    loop: start=0, step=1, limit=4
    $region2: #{tpu_custom_call.1} parent=1 // loop_pre_header
      _
    $region3: #{tpu_custom_call.1} parent=1 // loop_header
      %s27 = sphi 0, %s31
      %p28 = scmp.ge.s32.totalorder %s27, 4
      %s34 = sphi 0, %s46
      %s35 = sphi 0, %s42
      %s36 = sphi 0, %s34
      %s37 = sphi 0, %s35
      %s38 = sphi 0, %s36
      %s39 = sphi 0, %s37
      %s51 = sphi 0, %s53
      %s54 = sphi 0, %s51
      %s55 = sphi 0, %s54
      %s71 = sphi 0, %s55
      %s77 = sphi 0, %s79
      %s80 = sphi 0, %s77
      %s81 = sphi 0, %s80
      %s97 = sphi 0, %s81
      %s103 = sphi 0, %s105
      %s106 = sphi 0, %s103
      %s107 = sphi 0, %s106
      %s123 = sphi 0, %s107
      %s129 = sphi 0, %s131
      %s132 = sphi 0, %s129
      %s133 = sphi 0, %s132
      %s149 = sphi 0, %s133
      %s155 = sphi 0, %s157
      %s158 = sphi 0, %s155
      %s159 = sphi 0, %s158
      %s175 = sphi 0, %s159
      %s183 = sphi 0, %s185
      %s186 = sphi 0, %s183
      %s187 = sphi 0, %s186
      %s203 = sphi 0, %s187
    $region4: #{tpu_custom_call.1} parent=1 // loop_header_branch
      %30 = sbr.rel (%p28) target = $region8
    $region5: #{tpu_custom_call.1} parent=1 // loop_body
      %s32 = ssub.s32 %s27, 1
      %s33 = ssub.s32 %s27, 2
      %s40 = sadd.s32 1, %s35
      %p41 = scmp.ge.s32.totalorder %s40, 1
      %s42 = scalar_select %p41, 0, %s40
      %s43 = sadd.s32 1, %s34
      %s44 = scalar_select %p41, %s43, %s34
      %p45 = scmp.ge.s32.totalorder %s44, 2
      %s46 = scalar_select %p45, 0, %s44
      %s47 = ssub.s32 %s34, %s46
      %s48 = ssub.s32 %s35, %s42
      %s49 = sor.u32 %s47, %s48
      %p50 = scmp.eq.s32.totalorder %s49, 0
      %s52 = sadd.s32 %s51, 1
      %s53 = scalar_select %p50, %s51, %s52
      %p56 = pneg %p50
      %p57 = scmp.eq.s32.totalorder %s27, 1
      %p58 = por %p56, %p57
      %p59 = scmp.ne.s32.totalorder %s51, %s54
      %p60 = scmp.eq.s32.totalorder %s27, 0
      %p61 = por %p59, %p60
      %p62 = scmp.ne.s32.totalorder %s51, %s54
      %p63 = scmp.eq.s32.totalorder %s32, 1
      %p64 = por %p62, %p63
      %p65 = scmp.ne.s32.totalorder %s54, %s55
      %p66 = scmp.eq.s32.totalorder %s32, 0
      %p67 = por %p65, %p66
      %p68 = scmp.ne.s32.totalorder %s54, %s55
      %p69 = scmp.eq.s32.totalorder %s33, 1
      %p70 = por %p68, %p69
      %p72 = scmp.ne.s32.totalorder %s55, %s71
      %p73 = scmp.eq.s32.totalorder %s33, 0
      %p74 = por %p72, %p73
      %s75 = ssub.s32 %s34, %s46
      %p76 = scmp.eq.s32.totalorder %s75, 0
      %s78 = sadd.s32 %s77, 1
      %s79 = scalar_select %p76, %s77, %s78
      %p82 = pneg %p76
      %p83 = scmp.eq.s32.totalorder %s27, 1
      %p84 = por %p82, %p83
      %p85 = scmp.ne.s32.totalorder %s77, %s80
      %p86 = scmp.eq.s32.totalorder %s27, 0
      %p87 = por %p85, %p86
      %p88 = scmp.ne.s32.totalorder %s77, %s80
      %p89 = scmp.eq.s32.totalorder %s32, 1
      %p90 = por %p88, %p89
      %p91 = scmp.ne.s32.totalorder %s80, %s81
      %p92 = scmp.eq.s32.totalorder %s32, 0
      %p93 = por %p91, %p92
      %p94 = scmp.ne.s32.totalorder %s80, %s81
      %p95 = scmp.eq.s32.totalorder %s33, 1
      %p96 = por %p94, %p95
      %p98 = scmp.ne.s32.totalorder %s81, %s97
      %p99 = scmp.eq.s32.totalorder %s33, 0
      %p100 = por %p98, %p99
      %s101 = ssub.s32 %s34, %s46
      %p102 = scmp.eq.s32.totalorder %s101, 0
      %s104 = sadd.s32 %s103, 1
      %s105 = scalar_select %p102, %s103, %s104
      %p108 = pneg %p102
      %p109 = scmp.eq.s32.totalorder %s27, 1
      %p110 = por %p108, %p109
      %p111 = scmp.ne.s32.totalorder %s103, %s106
      %p112 = scmp.eq.s32.totalorder %s27, 0
      %p113 = por %p111, %p112
      %p114 = scmp.ne.s32.totalorder %s103, %s106
      %p115 = scmp.eq.s32.totalorder %s32, 1
      %p116 = por %p114, %p115
      %p117 = scmp.ne.s32.totalorder %s106, %s107
      %p118 = scmp.eq.s32.totalorder %s32, 0
      %p119 = por %p117, %p118
      %p120 = scmp.ne.s32.totalorder %s106, %s107
      %p121 = scmp.eq.s32.totalorder %s33, 1
      %p122 = por %p120, %p121
      %p124 = scmp.ne.s32.totalorder %s107, %s123
      %p125 = scmp.eq.s32.totalorder %s33, 0
      %p126 = por %p124, %p125
      %s127 = ssub.s32 %s34, %s46
      %p128 = scmp.eq.s32.totalorder %s127, 0
      %s130 = sadd.s32 %s129, 1
      %s131 = scalar_select %p128, %s129, %s130
      %p134 = pneg %p128
      %p135 = scmp.eq.s32.totalorder %s27, 1
      %p136 = por %p134, %p135
      %p137 = scmp.ne.s32.totalorder %s129, %s132
      %p138 = scmp.eq.s32.totalorder %s27, 0
      %p139 = por %p137, %p138
      %p140 = scmp.ne.s32.totalorder %s129, %s132
      %p141 = scmp.eq.s32.totalorder %s32, 1
      %p142 = por %p140, %p141
      %p143 = scmp.ne.s32.totalorder %s132, %s133
      %p144 = scmp.eq.s32.totalorder %s32, 0
      %p145 = por %p143, %p144
      %p146 = scmp.ne.s32.totalorder %s132, %s133
      %p147 = scmp.eq.s32.totalorder %s33, 1
      %p148 = por %p146, %p147
      %p150 = scmp.ne.s32.totalorder %s133, %s149
      %p151 = scmp.eq.s32.totalorder %s33, 0
      %p152 = por %p150, %p151
      %s153 = ssub.s32 %s34, %s46
      %p154 = scmp.eq.s32.totalorder %s153, 0
      %s156 = sadd.s32 %s155, 1
      %s157 = scalar_select %p154, %s155, %s156
      %p160 = pneg %p154
      %p161 = scmp.eq.s32.totalorder %s27, 1
      %p162 = por %p160, %p161
      %p163 = scmp.ne.s32.totalorder %s155, %s158
      %p164 = scmp.eq.s32.totalorder %s27, 0
      %p165 = por %p163, %p164
      %p166 = scmp.ne.s32.totalorder %s155, %s158
      %p167 = scmp.eq.s32.totalorder %s32, 1
      %p168 = por %p166, %p167
      %p169 = scmp.ne.s32.totalorder %s158, %s159
      %p170 = scmp.eq.s32.totalorder %s32, 0
      %p171 = por %p169, %p170
      %p172 = scmp.ne.s32.totalorder %s158, %s159
      %p173 = scmp.eq.s32.totalorder %s33, 1
      %p174 = por %p172, %p173
      %p176 = scmp.ne.s32.totalorder %s159, %s175
      %p177 = scmp.eq.s32.totalorder %s33, 0
      %p178 = por %p176, %p177
      %s179 = ssub.s32 %s34, %s46
      %s180 = ssub.s32 %s35, %s42
      %s181 = sor.u32 %s179, %s180
      %p182 = scmp.eq.s32.totalorder %s181, 0
      %s184 = sadd.s32 %s183, 1
      %s185 = scalar_select %p182, %s183, %s184
      %p188 = pneg %p182
      %p189 = scmp.eq.s32.totalorder %s27, 1
      %p190 = por %p188, %p189
      %p191 = scmp.ne.s32.totalorder %s183, %s186
      %p192 = scmp.eq.s32.totalorder %s27, 0
      %p193 = por %p191, %p192
      %p194 = scmp.ne.s32.totalorder %s183, %s186
      %p195 = scmp.eq.s32.totalorder %s32, 1
      %p196 = por %p194, %p195
      %p197 = scmp.ne.s32.totalorder %s186, %s187
      %p198 = scmp.eq.s32.totalorder %s32, 0
      %p199 = por %p197, %p198
      %p200 = scmp.ne.s32.totalorder %s186, %s187
      %p201 = scmp.eq.s32.totalorder %s33, 1
      %p202 = por %p200, %p201
      %p204 = scmp.ne.s32.totalorder %s187, %s203
      %p205 = scmp.eq.s32.totalorder %s33, 0
      %p206 = por %p204, %p205
      %p207 = scmp.le.s32.totalorder 1, %s27
      %p208 = scmp.lt.s32.totalorder %s27, 3
      %p209 = pnand %p207, %p208
      %p210 = pneg %p209
      // Predicated region
      $region9: #{tpu_custom_call.1} parent=5 // pred_check
        _
      $region10: #{tpu_custom_call.1} parent=5 // pred_check_branch
        %212 = sbr.rel (%p209) target = $region12
      $region11: #{tpu_custom_call.1} parent=5 // pred_region
        %s213 = ssub.s32 %s27, 1
      $region12: #{tpu_custom_call.1} parent=5 // pred_fallthru
        _
      %p214 = scmp.lt.s32.totalorder %s27, 2
      // Predicated region
      $region13: #{tpu_custom_call.1} parent=5 // pred_check
        %p215 = pneg %p214
      $region14: #{tpu_custom_call.1} parent=5 // pred_check_branch
        %217 = sbr.rel (%p215) target = $region16
      $region15: #{tpu_custom_call.1} parent=5 // pred_region
        // Predicated region
        $region17: #{tpu_custom_call.1} parent=15 // pred_check
          %p218 = pneg %p61
        $region18: #{tpu_custom_call.1} parent=15 // pred_check_branch
          %220 = sbr.rel (%p218) target = $region20
        $region19: #{tpu_custom_call.1} parent=15 // pred_region
          %s221 = smul.u32 4, %s35
          %p222 = scmp.lt.s32.totalorder %s34, 1
          %s223 = scalar_select %p222, %s34, 1
          %p224 = scmp.lt.s32.totalorder %s221, 3
          %s225 = scalar_select %p224, %s221, 3
          %s226 = smul.addr %s223, 4
          %s227 = sadd.s32 %s225, %s226
          %s228 = smul.addr %s227, 4
          %s229 = scalar_lea.vmem %s1, %s228
          %s230 = smul.u32 4, %s35
        $region20: #{tpu_custom_call.1} parent=15 // pred_fallthru
          _
        // Predicated region
        $region21: #{tpu_custom_call.1} parent=15 // pred_check
          %p231 = pneg %p87
        $region22: #{tpu_custom_call.1} parent=15 // pred_check_branch
          %233 = sbr.rel (%p231) target = $region24
        $region23: #{tpu_custom_call.1} parent=15 // pred_region
          %p234 = scmp.lt.s32.totalorder %s34, 1
          %s235 = scalar_select %p234, %s34, 1
          %s236 = smul.addr %s235, 2
          %s237 = scalar_lea.vmem %s2, %s236
        $region24: #{tpu_custom_call.1} parent=15 // pred_fallthru
          _
        // Predicated region
        $region25: #{tpu_custom_call.1} parent=15 // pred_check
          %p238 = pneg %p113
        $region26: #{tpu_custom_call.1} parent=15 // pred_check_branch
          %240 = sbr.rel (%p238) target = $region28
        $region27: #{tpu_custom_call.1} parent=15 // pred_region
          %s241 = sand.u32 %s103, 1
          %s242 = scalar_lea.sflag [#allocation5], %s241
          %s243 = sand.u32 %s103, 1
          %s244 = smul.addr %s243, 64
          %s245 = scalar_lea.vmem [#allocation4], %s244
          %s247 = ssub.s32 1024, 1024
          %248 = vsyncadd %s242, %s247
          %s249 = smul.addr %s34, 16
          %s250 = smul.addr %s249, 64
          %s251 = scalar_lea.hbm %s3, %s250
          %s252 = sshll.u32 %s245, 4
          %s253 = int_to_ptr.vmem [resolvable:$true] %s252
          %258 = dma.hbm_to_vmem [thread:$0]  %s251, 1024, %s253, %s242, 64, 64, 4
        $region28: #{tpu_custom_call.1} parent=15 // pred_fallthru
          _
        // Predicated region
        $region29: #{tpu_custom_call.1} parent=15 // pred_check
          %p259 = pneg %p139
        $region30: #{tpu_custom_call.1} parent=15 // pred_check_branch
          %261 = sbr.rel (%p259) target = $region32
        $region31: #{tpu_custom_call.1} parent=15 // pred_region
          %s262 = sand.u32 %s129, 1
          %s263 = scalar_lea.sflag [#allocation8], %s262
          %s264 = sand.u32 %s129, 1
          %s265 = smul.addr %s264, 64
          %s266 = scalar_lea.vmem [#allocation7], %s265
          %s268 = ssub.s32 1024, 1024
          %269 = vsyncadd %s263, %s268
          %s270 = smul.addr %s34, 16
          %s271 = smul.addr %s270, 64
          %s272 = scalar_lea.hbm %s4, %s271
          %s273 = sshll.u32 %s266, 4
          %s274 = int_to_ptr.vmem [resolvable:$true] %s273
          %279 = dma.hbm_to_vmem [thread:$0]  %s272, 1024, %s274, %s263, 64, 64, 4
        $region32: #{tpu_custom_call.1} parent=15 // pred_fallthru
          _
        // Predicated region
        $region33: #{tpu_custom_call.1} parent=15 // pred_check
          %p280 = pneg %p165
        $region34: #{tpu_custom_call.1} parent=15 // pred_check_branch
          %282 = sbr.rel (%p280) target = $region36
        $region35: #{tpu_custom_call.1} parent=15 // pred_region
          %p283 = scmp.lt.s32.totalorder %s34, 1
          %s284 = scalar_select %p283, %s34, 1
          %s285 = smul.addr %s284, 4
          %s286 = scalar_lea.vmem %s5, %s285
        $region36: #{tpu_custom_call.1} parent=15 // pred_fallthru
          _
      $region16: #{tpu_custom_call.1} parent=5 // pred_fallthru
        _
      %p287 = scmp.le.s32.totalorder 1, %s27
      %p288 = scmp.lt.s32.totalorder %s27, 3
      %p289 = pnand %p287, %p288
      %p290 = pneg %p289
      // Predicated region
      $region37: #{tpu_custom_call.1} parent=5 // pred_check
        _
      $region38: #{tpu_custom_call.1} parent=5 // pred_check_branch
        %292 = sbr.rel (%p289) target = $region40
      $region39: #{tpu_custom_call.1} parent=5 // pred_region
        %s293 = ssub.s32 %s27, 1
        %s294 = sand.u32 %s106, 1
        %s295 = scalar_lea.sflag [#allocation5], %s294
        %s296 = sand.u32 %s106, 1
        %s297 = smul.addr %s296, 64
        %s298 = scalar_lea.vmem [#allocation4], %s297
        // Predicated region
        $region41: #{tpu_custom_call.1} parent=39 // pred_check
          %p299 = pneg %p119
        $region42: #{tpu_custom_call.1} parent=39 // pred_check_branch
          %301 = sbr.rel (%p299) target = $region44
        $region43: #{tpu_custom_call.1} parent=39 // pred_region
          %302 = dma.done %s295, 1024
        $region44: #{tpu_custom_call.1} parent=39 // pred_fallthru
          _
        %s303 = sand.u32 %s132, 1
        %s304 = scalar_lea.sflag [#allocation8], %s303
        %s305 = sand.u32 %s132, 1
        %s306 = smul.addr %s305, 64
        %s307 = scalar_lea.vmem [#allocation7], %s306
        // Predicated region
        $region45: #{tpu_custom_call.1} parent=39 // pred_check
          %p308 = pneg %p145
        $region46: #{tpu_custom_call.1} parent=39 // pred_check_branch
          %310 = sbr.rel (%p308) target = $region48
        $region47: #{tpu_custom_call.1} parent=39 // pred_region
          %311 = dma.done %s304, 1024
        $region48: #{tpu_custom_call.1} parent=39 // pred_fallthru
          _
        %s312 = smul.u32 4, %s37
        %p313 = scmp.lt.s32.totalorder %s36, 1
        %s314 = scalar_select %p313, %s36, 1
        %p315 = scmp.lt.s32.totalorder %s312, 3
        %s316 = scalar_select %p315, %s312, 3
        %s317 = smul.addr %s314, 4
        %s318 = sadd.s32 %s316, %s317
        %s319 = smul.addr %s318, 4
        %s320 = scalar_lea.vmem %s1, %s319
        %p321 = pneg %p67
        %p322 = pneg %p64
        %p323 = scmp.lt.s32.totalorder %s36, 1
        %s324 = scalar_select %p323, %s36, 1
        %s325 = smul.addr %s324, 2
        %s326 = scalar_lea.vmem %s2, %s325
        %p327 = pneg %p93
        %p328 = pneg %p90
        %s329 = sand.u32 %s106, 1
        %s330 = scalar_lea.sflag [#allocation5], %s329
        %s331 = sand.u32 %s106, 1
        %s332 = smul.addr %s331, 64
        %s333 = scalar_lea.vmem [#allocation4], %s332
        %p334 = pneg %p119
        %p335 = pneg %p116
        %s336 = sand.u32 %s132, 1
        %s337 = scalar_lea.sflag [#allocation8], %s336
        %s338 = sand.u32 %s132, 1
        %s339 = smul.addr %s338, 64
        %s340 = scalar_lea.vmem [#allocation7], %s339
        %p341 = pneg %p145
        %p342 = pneg %p142
        %p343 = scmp.lt.s32.totalorder %s36, 1
        %s344 = scalar_select %p343, %s36, 1
        %s345 = smul.addr %s344, 4
        %s346 = scalar_lea.vmem %s5, %s345
        %p347 = pneg %p171
        %p348 = pneg %p168
        %p349 = pneg %p199
        %p350 = pneg %p196
        %s351 = sand.u32 %s186, 1
        %s352 = scalar_lea.sflag [#allocation6], %s351
        %s353 = sand.u32 %s186, 1
        %s354 = smul.addr %s353, 32
        %s355 = scalar_lea.vmem [#allocation9], %s354
        %s356 = smul.u32 4, %s37
        %p357 = scmp.lt.s32.totalorder %s36, 1
        %s358 = scalar_select %p357, %s36, 1
        %p359 = scmp.lt.s32.totalorder %s356, 3
        %s360 = scalar_select %p359, %s356, 3
        %s361 = smul.addr %s358, 4
        %s362 = sadd.s32 %s360, %s361
        %s363 = smul.addr %s362, 4
        %s364 = scalar_lea.vmem %s1, %s363
        %s365 = smul.u32 4, %s37
        %p366 = scmp.lt.s32.totalorder %s36, 1
        %s367 = scalar_select %p366, %s36, 1
        %s368 = smul.addr %s367, 2
        %s369 = scalar_lea.vmem %s2, %s368
        %p370 = scmp.lt.s32.totalorder %s36, 1
        %s371 = scalar_select %p370, %s36, 1
        %s372 = smul.addr %s371, 4
        %s373 = scalar_lea.vmem %s5, %s372
        %s374 = smul.u32 4, %s37
        %s376 = smul.u32 %s37, 32
        %s377 = sld [smem:[#allocation3 + %s36]]
        %p378 = scmp.lt.s32.totalorder %s376, %s377
        // Predicated region
        $region49: #{tpu_custom_call.1} parent=39 // pred_check
          %p379 = pneg %p378
        $region50: #{tpu_custom_call.1} parent=39 // pred_check_branch
          %381 = sbr.rel (%p379) target = $region52
        $region51: #{tpu_custom_call.1} parent=39 // pred_region
          %v382 = vld [vmem:[%s364] sm:$0xf]
          %v383 = vld [vmem:[%s364 + $0x4] sm:$0xf]
          %v384 = vld [vmem:[%s364 + $0x8] sm:$0xf]
          %v385 = vld [vmem:[%s364 + $0xc] sm:$0xf]
          %v386 = vld [vmem:[%s373] sm:$0x7]
          %v387 = vld [vmem:[%s369] sm:$0x3]
          %v388 = vlaneseq
          %v389 = vshrl.u32 %v388, 7
          %v390 = vsub.s32 0, %v389
          %v391 = vrot.slane %v386, %v390
          %v396 = vunpack.c.l.b16 %v382
          %v397 = vunpack.c.l.b16 %v383
          %v398 = vunpack.c.l.b16 %v384
          %v399 = vunpack.c.l.b16 %v385
          %v400 = vpack.c.b16 %v397, %v396
          %v401 = vpack.c.b16 %v399, %v398
          %vm402 = vcmask 31744
          %v404 = vsel %vm402, %v400, 0
          %v407 = vsel %vm402, %v401, 0
          %vm409 = vcmask 1041408
          %v411 = vsel %vm409, %v387, 0
          %413 = vmatprep.subr.bf16.mxu0 0
          %414 = vmatpush1.bf16.msra.mxu0 %v411
          %415 = vmatprep.subr.bf16.mxu0 0
          %416 = vmatpush1.bf16.msra.mxu0 0
          %417 = vmatprep.subr.bf16.mxu0 0
          %418 = vmatpush1.bf16.msra.mxu0 0
          %419 = vmatprep.subr.bf16.mxu0 0
          %420 = vmatpush1.bf16.msra.mxu0 0
          %421 = vmatprep.subr.bf16.mxu0 0
          %422 = vmatpush1.bf16.msra.mxu0 0
          %423 = vmatprep.subr.bf16.mxu0 0
          %424 = vmatpush1.bf16.msra.mxu0 0
          %425 = vmatprep.subr.bf16.mxu0 0
          %426 = vmatpush1.bf16.msra.mxu0 0
          %427 = vmatprep.subr.bf16.mxu0 0
          %428 = vmatpush1.bf16.msra.mxu0 0
          %429 = vmatprep.subr.bf16.mxu0 0
          %430 = vmatpush1.bf16.msra.mxu0 0
          %431 = vmatprep.subr.bf16.mxu0 0
          %432 = vmatpush1.bf16.msra.mxu0 0
          %433 = vmatprep.subr.bf16.mxu0 0
          %434 = vmatpush1.bf16.msra.mxu0 0
          %435 = vmatprep.subr.bf16.mxu0 0
          %436 = vmatpush1.bf16.msra.mxu0 0
          %437 = vmatprep.subr.bf16.mxu0 0
          %438 = vmatpush1.bf16.msra.mxu0 0
          %439 = vmatprep.subr.bf16.mxu0 0
          %440 = vmatpush1.bf16.msra.mxu0 0
          %441 = vmatprep.subr.bf16.mxu0 0
          %442 = vmatpush1.bf16.msra.mxu0 0
          %443 = vmatprep.subr.bf16.mxu0 0
          %444 = vmatpush1.bf16.msra.mxu0 0
          %445 = vmatprep.mubr.bf16.mxu0 0
          %446 = vmatmul.mubr.bf16.gmra.mrb[0].mxu0 %v404
          %v447 = vpop.f32.mrb[0].mxu0
          %v448 = vadd.f32 %v391, %v447
          %v449 = vpop.f32.mrb[0].mxu0
          %v450 = vpop.f32.mrb[0].mxu0
          %v451 = vadd.f32 %v391, %v450
          %v452 = vpop.f32.mrb[0].mxu0
          %453 = vmatprep.mubr.bf16.mxu0 0
          %454 = vmatmul.mubr.bf16.gmra.mrb[0].mxu0 %v407
          %v455 = vpop.f32.mrb[0].mxu0
          %v456 = vadd.f32 %v391, %v455
          %v457 = vpop.f32.mrb[0].mxu0
          %v458 = vpop.f32.mrb[0].mxu0
          %v459 = vadd.f32 %v391, %v458
          %v460 = vpop.f32.mrb[0].mxu0
          %461 = vdwg.mxu0
          %v462 = vmax.f32 %v448, 0.0
          %v463 = vmax.f32 %v451, 0.0
          %v464 = vmax.f32 %v456, 0.0
          %v465 = vmax.f32 %v459, 0.0
          %v466 = vpack.c.bf16 %v463, %v462
          %v467 = vpack.c.bf16 %v465, %v464
          %v468 = vld [vmem:[%s298] sm:$0xf]
          %v469 = vld [vmem:[%s298 + $0x4] sm:$0xf]
          %v470 = vld [vmem:[%s298 + $0x8] sm:$0xf]
          %v471 = vld [vmem:[%s298 + $0xc] sm:$0xf]
          %v472 = vld [vmem:[%s298 + $0x10] sm:$0xf]
          %v473 = vld [vmem:[%s298 + $0x14] sm:$0xf]
          %v474 = vld [vmem:[%s298 + $0x18] sm:$0xf]
          %v475 = vld [vmem:[%s298 + $0x1c] sm:$0xf]
          %v476 = vld [vmem:[%s298 + $0x20] sm:$0xf]
          %v477 = vld [vmem:[%s298 + $0x24] sm:$0xf]
          %v478 = vld [vmem:[%s298 + $0x28] sm:$0xf]
          %v479 = vld [vmem:[%s298 + $0x2c] sm:$0xf]
          %v480 = vld [vmem:[%s298 + $0x30] sm:$0xf]
          %v481 = vld [vmem:[%s298 + $0x34] sm:$0xf]
          %v482 = vld [vmem:[%s298 + $0x38] sm:$0xf]
          %v483 = vld [vmem:[%s298 + $0x3c] sm:$0xf]
          %v484 = vlaneseq
          %v485 = vshrl.u32 %v484, 7
          %v486 = vsub.s32 1, %v485
          %v487 = vrot.slane %v386, %v486
          %v504 = vunpack.c.l.b16 %v468
          %v505 = vunpack.c.l.b16 %v469
          %v506 = vunpack.c.l.b16 %v470
          %v507 = vunpack.c.l.b16 %v471
          %v508 = vunpack.c.l.b16 %v472
          %v509 = vunpack.c.l.b16 %v473
          %v510 = vunpack.c.l.b16 %v474
          %v511 = vunpack.c.l.b16 %v475
          %v512 = vunpack.c.l.b16 %v476
          %v513 = vunpack.c.l.b16 %v477
          %v514 = vunpack.c.l.b16 %v478
          %v515 = vunpack.c.l.b16 %v479
          %v516 = vunpack.c.l.b16 %v480
          %v517 = vunpack.c.l.b16 %v481
          %v518 = vunpack.c.l.b16 %v482
          %v519 = vunpack.c.l.b16 %v483
          %v520 = vpack.c.b16 %v505, %v504
          %v521 = vpack.c.b16 %v507, %v506
          %v522 = vpack.c.b16 %v509, %v508
          %v523 = vpack.c.b16 %v511, %v510
          %v524 = vpack.c.b16 %v513, %v512
          %v525 = vpack.c.b16 %v515, %v514
          %v526 = vpack.c.b16 %v517, %v516
          %v527 = vpack.c.b16 %v519, %v518
          %536 = vmatprep.subr.bf16.mxu0 0
          %537 = vmatpush1.bf16.msra.mxu0 %v520
          %538 = vmatprep.subr.bf16.mxu0 0
          %539 = vmatpush1.bf16.msra.mxu0 %v521
          %540 = vmatprep.subr.bf16.mxu0 0
          %541 = vmatpush1.bf16.msra.mxu0 %v522
          %542 = vmatprep.subr.bf16.mxu0 0
          %543 = vmatpush1.bf16.msra.mxu0 %v523
          %544 = vmatprep.subr.bf16.mxu0 0
          %545 = vmatpush1.bf16.msra.mxu0 %v524
          %546 = vmatprep.subr.bf16.mxu0 0
          %547 = vmatpush1.bf16.msra.mxu0 %v525
          %548 = vmatprep.subr.bf16.mxu0 0
          %549 = vmatpush1.bf16.msra.mxu0 %v526
          %550 = vmatprep.subr.bf16.mxu0 0
          %551 = vmatpush1.bf16.msra.mxu0 %v527
          %552 = vmatprep.subr.bf16.mxu0 0
          %553 = vmatpush1.bf16.msra.mxu0 0
          %554 = vmatprep.subr.bf16.mxu0 0
          %555 = vmatpush1.bf16.msra.mxu0 0
          %556 = vmatprep.subr.bf16.mxu0 0
          %557 = vmatpush1.bf16.msra.mxu0 0
          %558 = vmatprep.subr.bf16.mxu0 0
          %559 = vmatpush1.bf16.msra.mxu0 0
          %560 = vmatprep.subr.bf16.mxu0 0
          %561 = vmatpush1.bf16.msra.mxu0 0
          %562 = vmatprep.subr.bf16.mxu0 0
          %563 = vmatpush1.bf16.msra.mxu0 0
          %564 = vmatprep.subr.bf16.mxu0 0
          %565 = vmatpush1.bf16.msra.mxu0 0
          %566 = vmatprep.subr.bf16.mxu0 0
          %567 = vmatpush1.bf16.msra.mxu0 0
          %568 = vmatprep.mubr.bf16.mxu0 0
          %569 = vmatmul.mubr.bf16.gmra.mrb[0].mxu0 %v466
          %v570 = vpop.f32.mrb[0].mxu0
          %v571 = vadd.f32 %v487, %v570
          %v572 = vpop.f32.mrb[0].mxu0
          %v573 = vpop.f32.mrb[0].mxu0
          %v574 = vadd.f32 %v487, %v573
          %v575 = vpop.f32.mrb[0].mxu0
          %576 = vmatprep.mubr.bf16.mxu0 0
          %577 = vmatmul.mubr.bf16.gmra.mrb[0].mxu0 %v467
          %v578 = vpop.f32.mrb[0].mxu0
          %v579 = vadd.f32 %v487, %v578
          %v580 = vpop.f32.mrb[0].mxu0
          %v581 = vpop.f32.mrb[0].mxu0
          %v582 = vadd.f32 %v487, %v581
          %v583 = vpop.f32.mrb[0].mxu0
          %584 = vdwg.mxu0
          %v585 = vmax.f32 %v571, 0.0
          %v586 = vmax.f32 %v574, 0.0
          %v587 = vmax.f32 %v579, 0.0
          %v588 = vmax.f32 %v582, 0.0
          %v589 = vpack.c.bf16 %v586, %v585
          %v590 = vpack.c.bf16 %v588, %v587
          %v591 = vld [vmem:[%s307] sm:$0xf]
          %v592 = vld [vmem:[%s307 + $0x4] sm:$0xf]
          %v593 = vld [vmem:[%s307 + $0x8] sm:$0xf]
          %v594 = vld [vmem:[%s307 + $0xc] sm:$0xf]
          %v595 = vld [vmem:[%s307 + $0x10] sm:$0xf]
          %v596 = vld [vmem:[%s307 + $0x14] sm:$0xf]
          %v597 = vld [vmem:[%s307 + $0x18] sm:$0xf]
          %v598 = vld [vmem:[%s307 + $0x1c] sm:$0xf]
          %v599 = vld [vmem:[%s307 + $0x20] sm:$0xf]
          %v600 = vld [vmem:[%s307 + $0x24] sm:$0xf]
          %v601 = vld [vmem:[%s307 + $0x28] sm:$0xf]
          %v602 = vld [vmem:[%s307 + $0x2c] sm:$0xf]
          %v603 = vld [vmem:[%s307 + $0x30] sm:$0xf]
          %v604 = vld [vmem:[%s307 + $0x34] sm:$0xf]
          %v605 = vld [vmem:[%s307 + $0x38] sm:$0xf]
          %v606 = vld [vmem:[%s307 + $0x3c] sm:$0xf]
          %v607 = vlaneseq
          %v608 = vshrl.u32 %v607, 7
          %v609 = vsub.s32 2, %v608
          %v610 = vrot.slane %v386, %v609
          %v627 = vunpack.c.l.b16 %v591
          %v628 = vunpack.c.l.b16 %v592
          %v629 = vunpack.c.l.b16 %v593
          %v630 = vunpack.c.l.b16 %v594
          %v631 = vunpack.c.l.b16 %v595
          %v632 = vunpack.c.l.b16 %v596
          %v633 = vunpack.c.l.b16 %v597
          %v634 = vunpack.c.l.b16 %v598
          %v635 = vunpack.c.l.b16 %v599
          %v636 = vunpack.c.l.b16 %v600
          %v637 = vunpack.c.l.b16 %v601
          %v638 = vunpack.c.l.b16 %v602
          %v639 = vunpack.c.l.b16 %v603
          %v640 = vunpack.c.l.b16 %v604
          %v641 = vunpack.c.l.b16 %v605
          %v642 = vunpack.c.l.b16 %v606
          %v643 = vpack.c.b16 %v628, %v627
          %v644 = vpack.c.b16 %v630, %v629
          %v645 = vpack.c.b16 %v632, %v631
          %v646 = vpack.c.b16 %v634, %v633
          %v647 = vpack.c.b16 %v636, %v635
          %v648 = vpack.c.b16 %v638, %v637
          %v649 = vpack.c.b16 %v640, %v639
          %v650 = vpack.c.b16 %v642, %v641
          %659 = vmatprep.subr.bf16.mxu0 0
          %660 = vmatpush1.bf16.msra.mxu0 %v643
          %661 = vmatprep.subr.bf16.mxu0 0
          %662 = vmatpush1.bf16.msra.mxu0 %v644
          %663 = vmatprep.subr.bf16.mxu0 0
          %664 = vmatpush1.bf16.msra.mxu0 %v645
          %665 = vmatprep.subr.bf16.mxu0 0
          %666 = vmatpush1.bf16.msra.mxu0 %v646
          %667 = vmatprep.subr.bf16.mxu0 0
          %668 = vmatpush1.bf16.msra.mxu0 %v647
          %669 = vmatprep.subr.bf16.mxu0 0
          %670 = vmatpush1.bf16.msra.mxu0 %v648
          %671 = vmatprep.subr.bf16.mxu0 0
          %672 = vmatpush1.bf16.msra.mxu0 %v649
          %673 = vmatprep.subr.bf16.mxu0 0
          %674 = vmatpush1.bf16.msra.mxu0 %v650
          %675 = vmatprep.subr.bf16.mxu0 0
          %676 = vmatpush1.bf16.msra.mxu0 0
          %677 = vmatprep.subr.bf16.mxu0 0
          %678 = vmatpush1.bf16.msra.mxu0 0
          %679 = vmatprep.subr.bf16.mxu0 0
          %680 = vmatpush1.bf16.msra.mxu0 0
          %681 = vmatprep.subr.bf16.mxu0 0
          %682 = vmatpush1.bf16.msra.mxu0 0
          %683 = vmatprep.subr.bf16.mxu0 0
          %684 = vmatpush1.bf16.msra.mxu0 0
          %685 = vmatprep.subr.bf16.mxu0 0
          %686 = vmatpush1.bf16.msra.mxu0 0
          %687 = vmatprep.subr.bf16.mxu0 0
          %688 = vmatpush1.bf16.msra.mxu0 0
          %689 = vmatprep.subr.bf16.mxu0 0
          %690 = vmatpush1.bf16.msra.mxu0 0
          %691 = vmatprep.mubr.bf16.mxu0 0
          %692 = vmatmul.mubr.bf16.gmra.mrb[0].mxu0 %v589
          %v693 = vpop.f32.mrb[0].mxu0
          %v694 = vadd.f32 %v610, %v693
          %v695 = vpop.f32.mrb[0].mxu0
          %v696 = vpop.f32.mrb[0].mxu0
          %v697 = vadd.f32 %v610, %v696
          %v698 = vpop.f32.mrb[0].mxu0
          %699 = vmatprep.mubr.bf16.mxu0 0
          %700 = vmatmul.mubr.bf16.gmra.mrb[0].mxu0 %v590
          %v701 = vpop.f32.mrb[0].mxu0
          %v702 = vadd.f32 %v610, %v701
          %v703 = vpop.f32.mrb[0].mxu0
          %v704 = vpop.f32.mrb[0].mxu0
          %v705 = vadd.f32 %v610, %v704
          %v706 = vpop.f32.mrb[0].mxu0
          %707 = vdwg.mxu0
          %708 = vst [vmem:[%s355] sm:$0xff] %v694
          %709 = vst [vmem:[%s355 + $0x8] sm:$0xff] %v697
          %710 = vst [vmem:[%s355 + $0x10] sm:$0xff] %v702
          %711 = vst [vmem:[%s355 + $0x18] sm:$0xff] %v705
        $region52: #{tpu_custom_call.1} parent=39 // pred_fallthru
          _
        %s712 = sand.u32 %s186, 1
        %s713 = scalar_lea.sflag [#allocation6], %s712
        %s714 = sand.u32 %s186, 1
        %s715 = smul.addr %s714, 32
        %s716 = scalar_lea.vmem [#allocation9], %s715
        // Predicated region
        $region53: #{tpu_custom_call.1} parent=39 // pred_check
          %p717 = pneg %p196
        $region54: #{tpu_custom_call.1} parent=39 // pred_check_branch
          %719 = sbr.rel (%p717) target = $region56
        $region55: #{tpu_custom_call.1} parent=39 // pred_region
          %s720 = smul.u32 4, %s37
          %s722 = ssub.s32 512, 512
          %723 = vsyncadd %s713, %s722
          %s724 = smul.addr %s36, 4
          %s725 = sadd.s32 %s720, %s724
          %s726 = smul.addr %s725, 128
          %s727 = scalar_lea.hbm %s6, %s726
          %s728 = sshll.u32 %s716, 4
          %s729 = int_to_ptr.vmem [resolvable:$true] %s728
          %734 = dma.vmem_to_hbm [thread:$0]  %s729, 512, %s727, %s713, 128, 128, 8
        $region56: #{tpu_custom_call.1} parent=39 // pred_fallthru
          _
      $region40: #{tpu_custom_call.1} parent=5 // pred_fallthru
        _
      %p735 = scmp.le.s32.totalorder 2, %s27
      // Predicated region
      $region57: #{tpu_custom_call.1} parent=5 // pred_check
        %p736 = pneg %p735
      $region58: #{tpu_custom_call.1} parent=5 // pred_check_branch
        %738 = sbr.rel (%p736) target = $region60
      $region59: #{tpu_custom_call.1} parent=5 // pred_region
        %s739 = ssub.s32 %s27, 2
        // Predicated region
        $region61: #{tpu_custom_call.1} parent=59 // pred_check
          %p740 = pneg %p202
        $region62: #{tpu_custom_call.1} parent=59 // pred_check_branch
          %742 = sbr.rel (%p740) target = $region64
        $region63: #{tpu_custom_call.1} parent=59 // pred_region
          %s743 = sand.u32 %s187, 1
          %s744 = scalar_lea.sflag [#allocation6], %s743
          %s745 = sand.u32 %s187, 1
          %s746 = smul.addr %s745, 32
          %s747 = scalar_lea.vmem [#allocation9], %s746
          %748 = dma.done %s744, 512
        $region64: #{tpu_custom_call.1} parent=59 // pred_fallthru
          _
      $region60: #{tpu_custom_call.1} parent=5 // pred_fallthru
        _
    $region6: #{tpu_custom_call.1} parent=1 // loop_footer
      %s31 = sadd.s32 1, %s27
    $region7: #{tpu_custom_call.1} parent=1 // loop_footer_branch
      %26 = sbr.rel target = $region3
    $region8: #{tpu_custom_call.1} parent=1 // loop_exit
      _
    %749 = vsyncpa [#allocation5], 1
    %s750 = scalar_lea.sflag [#allocation5], 1
    %751 = vsyncpa %s750, 1
    %752 = vsyncpa [#allocation8], 1
    %s753 = scalar_lea.sflag [#allocation8], 1
    %754 = vsyncpa %s753, 1
    %755 = vsyncpa [#allocation6], 1
    %s756 = scalar_lea.sflag [#allocation6], 1
    %757 = vsyncpa %s756, 1

</llo_original>
